<compile_context>
chip_gen: v7x
topology: tpu7x:2x2x1
jax: 0.10.0
libtpu: 0.0.40
codegen_flags: <defaults>
</compile_context>

<pallas_src>
import functools

import jax
import jax.numpy as jnp
from jax.experimental import pallas as pl
from jax.experimental.pallas import tpu as pltpu

_MIB = 1024 * 1024


def _self_attention_kernel(x_ref, w1_ref, w2_ref, out_ref, att_ref, *,
                           batch_tile, seq_len, n_hops, matmul_dtype):
    # x_ref:   (TB*L, D)  rows of TB batch elements, batch-major
    # w1_ref:  (D, U), w2_ref: (U, H)   grid-invariant (single-buffered) weights
    # out_ref: (TB*H, D)  sublane-stacked output slab
    # att_ref: (TB*H, L)  sublane-stacked attention slab
    TB, L, H = batch_tile, seq_len, n_hops

    x_rows = x_ref[...]                                            # (TB*L, D) f32
    x_mm = x_rows if matmul_dtype is None else x_rows.astype(matmul_dtype)
    w1 = w1_ref[...]                                               # already matmul dtype
    w2 = w2_ref[...]

    # Flattened projections: one big MXU matmul over all TB*L rows each.
    h = jnp.tanh(jnp.dot(x_mm, w1, preferred_element_type=jnp.float32))  # (TB*L, U)
    if matmul_dtype is not None:
        h = h.astype(matmul_dtype)
    scores = jnp.dot(h, w2, preferred_element_type=jnp.float32)          # (TB*L, H)

    # permute(0, 2, 1) + softmax(-1), batched over the whole tile (no per-b loop).
    s3 = jnp.swapaxes(scores.reshape(TB, L, H), -1, -2)           # (TB, H, L)
    m = jnp.max(s3, axis=-1, keepdims=True)
    e = jnp.exp(s3 - m)
    att_hl = e / jnp.sum(e, axis=-1, keepdims=True)               # exact softmax, f32

    # Single consolidated attention store per grid step.
    att_ref[...] = att_hl.reshape(TB * H, L).astype(att_ref.dtype)

    # output = bmm(att, x): batched (H, L) @ (L, D), f32 accumulation.
    att_mm = att_hl if matmul_dtype is None else att_hl.astype(matmul_dtype)
    x3 = x_mm.reshape(TB, L, x_mm.shape[-1])
    out3 = jnp.einsum("bhl,bld->bhd", att_mm, x3,
                      preferred_element_type=jnp.float32)         # (TB, H, D)

    # Single sublane-stacked output store (unmasked vst lanes when D % 128 == 0).
    out_ref[...] = out3.reshape(TB * H, -1).astype(out_ref.dtype)


def _vmem_capacity_bytes():
    try:
        return int(pltpu.get_tpu_info().vmem_capacity_bytes)
    except Exception:
        return 64 * _MIB                       # conservative (v7x-sized) fallback


def _device_kind():
    try:
        return jax.devices()[0].device_kind.lower()
    except Exception:
        return ""


def _choose_batch_tile(B, L, D, U, H, *, x_itemsize, w_itemsize,
                       vmem_budget_bytes, target_rows, prefer_multi_step):
    """Largest TB with TB | B, (8, .)-aligned blocks, a VMEM-safe footprint and
    ~target_rows rows of x per step; on v7x prefer >= 2 grid steps."""
    def vmem_bytes(tb):
        x_blk = tb * L * D * x_itemsize
        out_blk = tb * H * D * 4
        att_blk = tb * H * L * 4
        weights = (D * U + U * H) * w_itemsize            # single-buffered
        return 2 * (x_blk + out_blk + att_blk) + weights  # double-buffered blocks

    def legal(tb):
        if B % tb != 0:
            return False
        return tb == B or ((tb * L) % 8 == 0 and (tb * H) % 8 == 0)

    candidates = [tb for tb in range(1, B + 1) if legal(tb)]
    fitting = [tb for tb in candidates if vmem_bytes(tb) <= vmem_budget_bytes]
    if not fitting:
        fitting = [min(candidates)]                       # smallest legal tile
    pool = fitting
    if prefer_multi_step:
        multi = [tb for tb in fitting if tb <= B // 2]
        if multi:
            pool = multi
    capped = [tb for tb in pool if tb * L <= target_rows]
    tb = max(capped) if capped else min(pool)
    return tb, vmem_bytes(tb)


def self_attention(x, w1, w2, *, matmul_dtype="auto", batch_tile=None):
    """x: (B, L, D); w1 = ws1.weight.T: (D, U); w2 = ws2.weight.T: (U, H).
    Returns (output (B, H, D), att (B, H, L)) -- same as SelfAttention.forward."""
    B, L, D = x.shape
    D1, U = w1.shape
    U2, H = w2.shape
    assert D1 == D and U2 == U, "weights must be (D, U) and (U, H)"

    kind = _device_kind()
    if matmul_dtype == "auto":
        # bf16 MXU operands pay off on v6e/v7x; keep exact f32 elsewhere.
        matmul_dtype = jnp.bfloat16 if ("v6" in kind or "v7" in kind) else None

    # Generation-aware VMEM sizing (128 MiB on v5e/v6e, 64 MiB on v7x).
    capacity = _vmem_capacity_bytes()
    vmem_limit = max(16 * _MIB, min(capacity - 16 * _MIB, (capacity * 7) // 8))
    vmem_budget = (vmem_limit * 5) // 6
    target_rows = 1024 if capacity >= 96 * _MIB else 256
    prefer_multi_step = "v7" in kind and B >= 2

    w_itemsize = 4 if matmul_dtype is None else jnp.dtype(matmul_dtype).itemsize
    vmem_est = 0
    if batch_tile is None:
        batch_tile, vmem_est = _choose_batch_tile(
            B, L, D, U, H,
            x_itemsize=jnp.dtype(x.dtype).itemsize, w_itemsize=w_itemsize,
            vmem_budget_bytes=vmem_budget, target_rows=target_rows,
            prefer_multi_step=prefer_multi_step)
    TB = batch_tile
    assert B % TB == 0, "batch tile must divide the batch size"
    assert TB == B or ((TB * L) % 8 == 0 and (TB * H) % 8 == 0), \
        "batch tile must give (8, .)-aligned blocks"
    # Graceful degradation: if even the smallest legal tile exceeds the budget,
    # raise the compiler limit (capped at physical VMEM) instead of failing.
    vmem_limit = min(capacity, max(vmem_limit, vmem_est + 4 * _MIB))

    grid = (B // TB,)
    w1c = w1 if matmul_dtype is None else w1.astype(matmul_dtype)
    w2c = w2 if matmul_dtype is None else w2.astype(matmul_dtype)
    x2d = x.reshape(B * L, D)

    kernel = functools.partial(_self_attention_kernel, batch_tile=TB,
                               seq_len=L, n_hops=H, matmul_dtype=matmul_dtype)

    def _run(single_buffer_weights):
        w_kwargs = ({"pipeline_mode": pl.Buffered(1)}
                    if single_buffer_weights else {})
        return pl.pallas_call(
            kernel,
            out_shape=(jax.ShapeDtypeStruct((B * H, D), jnp.float32),
                       jax.ShapeDtypeStruct((B * H, L), jnp.float32)),
            grid_spec=pltpu.PrefetchScalarGridSpec(
                num_scalar_prefetch=0,
                grid=grid,
                in_specs=[
                    # x, pre-flattened to (B*L, D): TB*L rows per grid step.
                    pl.BlockSpec((TB * L, D), lambda b: (b, 0)),
                    # Grid-invariant weights: constant index_map, single buffer.
                    pl.BlockSpec((D, U), lambda b: (0, 0), **w_kwargs),
                    pl.BlockSpec((U, H), lambda b: (0, 0), **w_kwargs),
                ],
                out_specs=[
                    pl.BlockSpec((TB * H, D), lambda b: (b, 0)),
                    pl.BlockSpec((TB * H, L), lambda b: (b, 0)),
                ],
            ),
            compiler_params=pltpu.CompilerParams(
                # Batch axis is embarrassingly parallel -> v7x megacore sharding.
                dimension_semantics=("parallel",),
                vmem_limit_bytes=int(vmem_limit),
            ),
        )(x2d, w1c, w2c)

    try:
        out2d, att2d = _run(True)
    except Exception:
        # pl.Buffered(1) / pipeline_mode unsupported on this jax build: fall
        # back to default double-buffered weights (correctness unchanged).
        out2d, att2d = _run(False)

    return out2d.reshape(B, H, D), att2d.reshape(B, H, L)


def _reference(x, w1, w2):
    h = jnp.tanh(jnp.einsum("bld,du->blu", x, w1))
    s = jnp.einsum("blu,uh->blh", h, w2)
    att = jax.nn.softmax(jnp.transpose(s, (0, 2, 1)), axis=-1)
    out = jnp.einsum("bhl,bld->bhd", att, x)
    return out, att


if __name__ == "__main__":
    key = jax.random.PRNGKey(0)
    B, L = 2, 8          # batch, sequence length
    D, U, H = 32, 16, 4  # input_size (n_embd), attention-unit, attention-hops

    kx, k1, k2 = jax.random.split(key, 3)
    x = jax.random.normal(kx, (B, L, D), dtype=jnp.float32)
    w1 = jax.random.normal(k1, (D, U), dtype=jnp.float32) * 0.1   # ws1.weight.T
    w2 = jax.random.normal(k2, (U, H), dtype=jnp.float32) * 0.1   # ws2.weight.T

    ref_out, ref_att = _reference(x, w1, w2)

    # Exact-parity path (f32 MXU operands, exact softmax division).
    out, att = self_attention(x, w1, w2, matmul_dtype=None)
    out = jax.block_until_ready(out)
    att = jax.block_until_ready(att)
    assert out.shape == (B, H, D) and att.shape == (B, H, L)
    assert jnp.allclose(out, ref_out, atol=1e-2, rtol=1e-2)
    assert jnp.allclose(att, ref_att, atol=1e-2, rtol=1e-2)
    assert jnp.allclose(jnp.sum(att, axis=-1), 1.0, atol=1e-4)

    # Generation default ("auto": bf16 MXU operands on v6e/v7x, f32 elsewhere).
    out_a, att_a = self_attention(x, w1, w2)
    out_a = jax.block_until_ready(out_a)
    att_a = jax.block_until_ready(att_a)
    assert jnp.allclose(out_a, ref_out, atol=5e-2, rtol=5e-2)
    assert jnp.allclose(att_a, ref_att, atol=5e-2, rtol=5e-2)

    print("KERNEL_OK")
</pallas_src>

<mosaic_0001>
module attributes {stable_mosaic.version = 11 : i64} {
  func.func @_self_attention_kernel(%arg0: i32, %arg1: memref<16x32xf32, #tpu.memory_space<vmem>>, %arg2: memref<32x16xf32, #tpu.memory_space<vmem>>, %arg3: memref<16x4xf32, #tpu.memory_space<vmem>>, %arg4: memref<8x32xf32, #tpu.memory_space<vmem>>, %arg5: memref<8x8xf32, #tpu.memory_space<vmem>>) attributes {dimension_semantics = [#tpu.dimension_semantics<parallel>], iteration_bounds = array<i64: 1>, scalar_prefetch = 0 : i64, scratch_operands = 0 : i64, tpu.core_type = #tpu.core_type<tc>, window_params = [{transform_indices = @transform_0, window_bounds = array<i64: 16, 32>}, {pipeline_mode = #tpu.pipeline_mode<synchronous>, transform_indices = @transform_1, window_bounds = array<i64: 32, 16>}, {pipeline_mode = #tpu.pipeline_mode<synchronous>, transform_indices = @transform_2, window_bounds = array<i64: 16, 4>}, {transform_indices = @transform_3, window_bounds = array<i64: 8, 32>}, {transform_indices = @transform_4, window_bounds = array<i64: 8, 8>}]} {
    %c0 = arith.constant 0 : index
    %c0_0 = arith.constant 0 : index
    %0 = vector.load %arg1[%c0, %c0_0] : memref<16x32xf32, #tpu.memory_space<vmem>>, vector<16x32xf32>
    %c0_1 = arith.constant 0 : index
    %c0_2 = arith.constant 0 : index
    %1 = vector.load %arg2[%c0_1, %c0_2] : memref<32x16xf32, #tpu.memory_space<vmem>>, vector<32x16xf32>
    %c0_3 = arith.constant 0 : index
    %c0_4 = arith.constant 0 : index
    %2 = vector.load %arg3[%c0_3, %c0_4] : memref<16x4xf32, #tpu.memory_space<vmem>>, vector<16x4xf32>
    %cst = arith.constant dense<0.000000e+00> : vector<16x16xf32>
    %3 = tpu.matmul %0, %1, %cst {dimension_numbers = #tpu.dot_dimension_numbers<[1], [0], [0], [1], [0, 0, 1, 1], [], []>} : vector<16x32xf32>, vector<32x16xf32>, vector<16x16xf32> -> vector<16x16xf32>
    %4 = math.tanh %3 : vector<16x16xf32>
    %cst_5 = arith.constant dense<0.000000e+00> : vector<16x4xf32>
    %5 = tpu.matmul %4, %2, %cst_5 {dimension_numbers = #tpu.dot_dimension_numbers<[1], [0], [0], [1], [0, 0, 1, 1], [], []>} : vector<16x16xf32>, vector<16x4xf32>, vector<16x4xf32> -> vector<16x4xf32>
    %6 = vector.shape_cast %5 : vector<16x4xf32> to vector<2x8x4xf32>
    %7 = tpu.transpose %6, [0, 2, 1] : vector<2x8x4xf32> -> vector<2x4x8xf32>
    %cst_6 = arith.constant dense<0xFF800000> : vector<2x4xf32>
    %8 = vector.multi_reduction <maximumf>, %7, %cst_6 [2] : vector<2x4x8xf32> to vector<2x4xf32>
    %9 = vector.shape_cast %8 : vector<2x4xf32> to vector<2x4x1xf32>
    %10 = vector.broadcast %9 : vector<2x4x1xf32> to vector<2x4x8xf32>
    %11 = arith.subf %7, %10 : vector<2x4x8xf32>
    %12 = math.exp %11 : vector<2x4x8xf32>
    %cst_7 = arith.constant dense<0.000000e+00> : vector<2x4xf32>
    %13 = vector.multi_reduction <add>, %12, %cst_7 [2] : vector<2x4x8xf32> to vector<2x4xf32>
    %14 = vector.shape_cast %13 : vector<2x4xf32> to vector<2x4x1xf32>
    %15 = vector.broadcast %14 : vector<2x4x1xf32> to vector<2x4x8xf32>
    %16 = arith.divf %12, %15 : vector<2x4x8xf32>
    %17 = vector.shape_cast %16 : vector<2x4x8xf32> to vector<8x8xf32>
    %c0_8 = arith.constant 0 : index
    %c0_9 = arith.constant 0 : index
    %18 = vector.load %arg5[%c0_8, %c0_9] : memref<8x8xf32, #tpu.memory_space<vmem>>, vector<8x8xf32>
    tpu.vector_store %arg5[%c0_8, %c0_9], %17 {strides = array<i32>} : memref<8x8xf32, #tpu.memory_space<vmem>>, vector<8x8xf32>,
    %19 = vector.shape_cast %0 : vector<16x32xf32> to vector<2x8x32xf32>
    "tpu.trace_start"() <{level = 10 : i32, message = "bhl,bld->bhd"}> : () -> ()
    %cst_10 = arith.constant dense<0.000000e+00> : vector<2x4x32xf32>
    %20 = tpu.matmul %16, %19, %cst_10 {dimension_numbers = #tpu.dot_dimension_numbers<[2], [1], [1], [2], [0, 0, 0, 1, 1, 2], [0], [0]>} : vector<2x4x8xf32>, vector<2x8x32xf32>, vector<2x4x32xf32> -> vector<2x4x32xf32>
    "tpu.trace_stop"() : () -> ()
    %21 = vector.shape_cast %20 : vector<2x4x32xf32> to vector<8x32xf32>
    %c0_11 = arith.constant 0 : index
    %c0_12 = arith.constant 0 : index
    %22 = vector.load %arg4[%c0_11, %c0_12] : memref<8x32xf32, #tpu.memory_space<vmem>>, vector<8x32xf32>
    tpu.vector_store %arg4[%c0_11, %c0_12], %21 {strides = array<i32>} : memref<8x32xf32, #tpu.memory_space<vmem>>, vector<8x32xf32>,
    return
  }
  func.func @transform_0(%arg0: i32) -> (i32, i32) {
    %c0_i32 = arith.constant 0 : i32
    %c0_i32_0 = arith.constant 0 : i32
    return %arg0, %c0_i32 : i32, i32
  }
  func.func @transform_1(%arg0: i32) -> (i32, i32) {
    %c0_i32 = arith.constant 0 : i32
    %c0_i32_0 = arith.constant 0 : i32
    %c0_i32_1 = arith.constant 0 : i32
    return %c0_i32, %c0_i32_0 : i32, i32
  }
  func.func @transform_2(%arg0: i32) -> (i32, i32) {
    %c0_i32 = arith.constant 0 : i32
    %c0_i32_0 = arith.constant 0 : i32
    %c0_i32_1 = arith.constant 0 : i32
    return %c0_i32, %c0_i32_0 : i32, i32
  }
  func.func @transform_3(%arg0: i32) -> (i32, i32) {
    %c0_i32 = arith.constant 0 : i32
    %c0_i32_0 = arith.constant 0 : i32
    return %arg0, %c0_i32 : i32, i32
  }
  func.func @transform_4(%arg0: i32) -> (i32, i32) {
    %c0_i32 = arith.constant 0 : i32
    %c0_i32_0 = arith.constant 0 : i32
    return %arg0, %c0_i32 : i32, i32
  }
}

module attributes {stable_mosaic.version = 11 : i64} {
  func.func @_self_attention_kernel(%arg0: i32, %arg1: memref<16x32xf32, #tpu.memory_space<vmem>>, %arg2: memref<32x16xf32, #tpu.memory_space<vmem>>, %arg3: memref<16x4xf32, #tpu.memory_space<vmem>>, %arg4: memref<8x32xf32, #tpu.memory_space<vmem>>, %arg5: memref<8x8xf32, #tpu.memory_space<vmem>>) attributes {dimension_semantics = [#tpu.dimension_semantics<parallel>], iteration_bounds = array<i64: 1>, scalar_prefetch = 0 : i64, scratch_operands = 0 : i64, tpu.core_type = #tpu.core_type<tc>, window_params = [{transform_indices = @transform_0, window_bounds = array<i64: 16, 32>}, {pipeline_mode = #tpu.pipeline_mode<synchronous>, transform_indices = @transform_1, window_bounds = array<i64: 32, 16>}, {pipeline_mode = #tpu.pipeline_mode<synchronous>, transform_indices = @transform_2, window_bounds = array<i64: 16, 4>}, {transform_indices = @transform_3, window_bounds = array<i64: 8, 32>}, {transform_indices = @transform_4, window_bounds = array<i64: 8, 8>}]} {
    %c0 = arith.constant 0 : index
    %c0_0 = arith.constant 0 : index
    %0 = vector.load %arg1[%c0, %c0_0] : memref<16x32xf32, #tpu.memory_space<vmem>>, vector<16x32xf32>
    %c0_1 = arith.constant 0 : index
    %c0_2 = arith.constant 0 : index
    %1 = vector.load %arg2[%c0_1, %c0_2] : memref<32x16xf32, #tpu.memory_space<vmem>>, vector<32x16xf32>
    %c0_3 = arith.constant 0 : index
    %c0_4 = arith.constant 0 : index
    %2 = vector.load %arg3[%c0_3, %c0_4] : memref<16x4xf32, #tpu.memory_space<vmem>>, vector<16x4xf32>
    %cst = arith.constant dense<0.000000e+00> : vector<16x16xf32>
    %3 = tpu.matmul %0, %1, %cst {dimension_numbers = #tpu.dot_dimension_numbers<[1], [0], [0], [1], [0, 0, 1, 1], [], []>} : vector<16x32xf32>, vector<32x16xf32>, vector<16x16xf32> -> vector<16x16xf32>
    %4 = math.tanh %3 : vector<16x16xf32>
    %cst_5 = arith.constant dense<0.000000e+00> : vector<16x4xf32>
    %5 = tpu.matmul %4, %2, %cst_5 {dimension_numbers = #tpu.dot_dimension_numbers<[1], [0], [0], [1], [0, 0, 1, 1], [], []>} : vector<16x16xf32>, vector<16x4xf32>, vector<16x4xf32> -> vector<16x4xf32>
    %6 = vector.shape_cast %5 : vector<16x4xf32> to vector<2x8x4xf32>
    %7 = tpu.transpose %6, [0, 2, 1] : vector<2x8x4xf32> -> vector<2x4x8xf32>
    %cst_6 = arith.constant dense<0xFF800000> : vector<2x4xf32>
    %8 = vector.multi_reduction <maximumf>, %7, %cst_6 [2] : vector<2x4x8xf32> to vector<2x4xf32>
    %9 = vector.shape_cast %8 : vector<2x4xf32> to vector<2x4x1xf32>
    %10 = vector.broadcast %9 : vector<2x4x1xf32> to vector<2x4x8xf32>
    %11 = arith.subf %7, %10 : vector<2x4x8xf32>
    %12 = math.exp %11 : vector<2x4x8xf32>
    %cst_7 = arith.constant dense<0.000000e+00> : vector<2x4xf32>
    %13 = vector.multi_reduction <add>, %12, %cst_7 [2] : vector<2x4x8xf32> to vector<2x4xf32>
    %14 = vector.shape_cast %13 : vector<2x4xf32> to vector<2x4x1xf32>
    %15 = vector.broadcast %14 : vector<2x4x1xf32> to vector<2x4x8xf32>
    %16 = arith.divf %12, %15 : vector<2x4x8xf32>
    %17 = vector.shape_cast %16 : vector<2x4x8xf32> to vector<8x8xf32>
    %c0_8 = arith.constant 0 : index
    %c0_9 = arith.constant 0 : index
    %18 = vector.load %arg5[%c0_8, %c0_9] : memref<8x8xf32, #tpu.memory_space<vmem>>, vector<8x8xf32>
    tpu.vector_store %arg5[%c0_8, %c0_9], %17 {strides = array<i32>} : memref<8x8xf32, #tpu.memory_space<vmem>>, vector<8x8xf32>,
    %19 = vector.shape_cast %0 : vector<16x32xf32> to vector<2x8x32xf32>
    "tpu.trace_start"() <{level = 10 : i32, message = "bhl,bld->bhd"}> : () -> ()
    %cst_10 = arith.constant dense<0.000000e+00> : vector<2x4x32xf32>
    %20 = tpu.matmul %16, %19, %cst_10 {dimension_numbers = #tpu.dot_dimension_numbers<[2], [1], [1], [2], [0, 0, 0, 1, 1, 2], [0], [0]>} : vector<2x4x8xf32>, vector<2x8x32xf32>, vector<2x4x32xf32> -> vector<2x4x32xf32>
    "tpu.trace_stop"() : () -> ()
    %21 = vector.shape_cast %20 : vector<2x4x32xf32> to vector<8x32xf32>
    %c0_11 = arith.constant 0 : index
    %c0_12 = arith.constant 0 : index
    %22 = vector.load %arg4[%c0_11, %c0_12] : memref<8x32xf32, #tpu.memory_space<vmem>>, vector<8x32xf32>
    tpu.vector_store %arg4[%c0_11, %c0_12], %21 {strides = array<i32>} : memref<8x32xf32, #tpu.memory_space<vmem>>, vector<8x32xf32>,
    return
  }
  func.func @transform_0(%arg0: i32) -> (i32, i32) {
    %c0_i32 = arith.constant 0 : i32
    %c0_i32_0 = arith.constant 0 : i32
    return %arg0, %c0_i32 : i32, i32
  }
  func.func @transform_1(%arg0: i32) -> (i32, i32) {
    %c0_i32 = arith.constant 0 : i32
    %c0_i32_0 = arith.constant 0 : i32
    %c0_i32_1 = arith.constant 0 : i32
    return %c0_i32, %c0_i32_0 : i32, i32
  }
  func.func @transform_2(%arg0: i32) -> (i32, i32) {
    %c0_i32 = arith.constant 0 : i32
    %c0_i32_0 = arith.constant 0 : i32
    %c0_i32_1 = arith.constant 0 : i32
    return %c0_i32, %c0_i32_0 : i32, i32
  }
  func.func @transform_3(%arg0: i32) -> (i32, i32) {
    %c0_i32 = arith.constant 0 : i32
    %c0_i32_0 = arith.constant 0 : i32
    return %arg0, %c0_i32 : i32, i32
  }
  func.func @transform_4(%arg0: i32) -> (i32, i32) {
    %c0_i32 = arith.constant 0 : i32
    %c0_i32_0 = arith.constant 0 : i32
    return %arg0, %c0_i32 : i32, i32
  }
}

</mosaic_0001>

<llo_original>
// kernel: tpu_custom_call.1
$region0: #{tpu_custom_call.1}
  #allocation0 [shape = 'u32[]', space=smem, size = 0x4, offset = 0x4, fixed_abs, tag = 'smem constant byte address 0x4 - core index']
  #allocation1 [shape = 'u32[144,128]{1,0:T(1,128)}', space=vmem, size = 0x12000, scoped, tag = 'internal scratch']
  %s0 = inlined_call_operand.vmem [shape: f32[16,32], index: 0, kind: input, shape index: {}]
  %s1 = inlined_call_operand.vmem [shape: f32[32,16], index: 1, kind: input, shape index: {}]
  %s2 = inlined_call_operand.vmem [shape: f32[16,4], index: 2, kind: input, shape index: {}]
  %s3 = inlined_call_operand.hbm [shape: f32[8,32], index: 3, kind: output, shape index: {0}]
  %s4 = inlined_call_operand.hbm [shape: f32[8,8], index: 4, kind: output, shape index: {1}]
  %5 = xla_tuple %s3, %s4
  %s6 = sld [smem:[#allocation0]]
  $region30: #{tpu_custom_call.1} parent=0
    _
  %s8 = ssub.s32 1, %s6
  %s9 = scalar_select 0, %s8, %s6
  $region1: #{tpu_custom_call.1} parent=0
    #allocation2 [shape = 'u8[4096]{0}', space=vmem, size = 0x1000, scoped, tag = 'output window, operand 0, single buffered']
    #allocation3 [shape = 's32[1]{0}', space=sflag, size = 0x4, scoped, tag = 'scoped memory for tpu_custom_call.1']
    #allocation4 [shape = 'u8[4096]{0}', space=vmem, size = 0x1000, scoped, tag = 'output window, operand 1, single buffered']
    #allocation5 [shape = 's32[1]{0}', space=sflag, size = 0x4, scoped, tag = 'scoped memory for tpu_custom_call.1']
    %10 = vsyncpa [#allocation3], 0
    %11 = vsyncpa [#allocation5], 0
    // Predicated region
    $region2: #{tpu_custom_call.1} parent=1 // pred_check
      _
    $region3: #{tpu_custom_call.1} parent=1 // pred_check_branch
      %13 = sbr.rel (0) target = $region5
    $region4: #{tpu_custom_call.1} parent=1 // pred_region
      _
    $region5: #{tpu_custom_call.1} parent=1 // pred_fallthru
      _
    // Predicated region
    $region6: #{tpu_custom_call.1} parent=1 // pred_check
      _
    $region7: #{tpu_custom_call.1} parent=1 // pred_check_branch
      %15 = sbr.rel (0) target = $region9
    $region8: #{tpu_custom_call.1} parent=1 // pred_region
      _
    $region9: #{tpu_custom_call.1} parent=1 // pred_fallthru
      _
    // Predicated region
    $region10: #{tpu_custom_call.1} parent=1 // pred_check
      _
    $region11: #{tpu_custom_call.1} parent=1 // pred_check_branch
      %17 = sbr.rel (0) target = $region13
    $region12: #{tpu_custom_call.1} parent=1 // pred_region
      _
    $region13: #{tpu_custom_call.1} parent=1 // pred_fallthru
      _
    %v18 = vld [vmem:[%s0] sm:$0xff]
    %v19 = vld [vmem:[%s0 + $0x8] sm:$0xff]
    %v20 = vld [vmem:[%s1] sm:$0xff]
    %v21 = vld [vmem:[%s1 + $0x8] sm:$0xff]
    %v22 = vld [vmem:[%s1 + $0x10] sm:$0xff]
    %v23 = vld [vmem:[%s1 + $0x18] sm:$0xff]
    %v24 = vld [vmem:[%s2] sm:$0xff]
    %v25 = vld [vmem:[%s2 + $0x8] sm:$0xff]
    %vm26 = vcmask 261120
    %v28 = vsel %vm26, %v18, 0
    %v31 = vsel %vm26, %v19, 0
    %33 = vmatprep.subr.mxu0 0.0
    %34 = vmatpush1.msra.mxu0 %v20
    %35 = vmatprep.subr.mxu0 0.0
    %36 = vmatpush1.msra.mxu0 %v21
    %37 = vmatprep.subr.mxu0 0.0
    %38 = vmatpush1.msra.mxu0 %v22
    %39 = vmatprep.subr.mxu0 0.0
    %40 = vmatpush1.msra.mxu0 %v23
    %41 = vmatprep.subr.mxu0 0.0
    %42 = vmatpush1.msra.mxu0 0.0
    %43 = vmatprep.subr.mxu0 0.0
    %44 = vmatpush1.msra.mxu0 0.0
    %45 = vmatprep.subr.mxu0 0.0
    %46 = vmatpush1.msra.mxu0 0.0
    %47 = vmatprep.subr.mxu0 0.0
    %48 = vmatpush1.msra.mxu0 0.0
    %49 = vmatprep.subr.mxu0 0.0
    %50 = vmatpush1.msra.mxu0 0.0
    %51 = vmatprep.subr.mxu0 0.0
    %52 = vmatpush1.msra.mxu0 0.0
    %53 = vmatprep.subr.mxu0 0.0
    %54 = vmatpush1.msra.mxu0 0.0
    %55 = vmatprep.subr.mxu0 0.0
    %56 = vmatpush1.msra.mxu0 0.0
    %57 = vmatprep.subr.mxu0 0.0
    %58 = vmatpush1.msra.mxu0 0.0
    %59 = vmatprep.subr.mxu0 0.0
    %60 = vmatpush1.msra.mxu0 0.0
    %61 = vmatprep.subr.mxu0 0.0
    %62 = vmatpush1.msra.mxu0 0.0
    %63 = vmatprep.subr.mxu0 0.0
    %64 = vmatpush1.msra.mxu0 0.0
    %65 = vmatprep.subr.mxu0 0.0
    %66 = vmatpush1.msra.mxu0 0.0
    %67 = vmatprep.subr.mxu0 0.0
    %68 = vmatpush1.msra.mxu0 0.0
    %69 = vmatprep.subr.mxu0 0.0
    %70 = vmatpush1.msra.mxu0 0.0
    %71 = vmatprep.subr.mxu0 0.0
    %72 = vmatpush1.msra.mxu0 0.0
    %73 = vmatprep.subr.mxu0 0.0
    %74 = vmatpush1.msra.mxu0 0.0
    %75 = vmatprep.subr.mxu0 0.0
    %76 = vmatpush1.msra.mxu0 0.0
    %77 = vmatprep.subr.mxu0 0.0
    %78 = vmatpush1.msra.mxu0 0.0
    %79 = vmatprep.subr.mxu0 0.0
    %80 = vmatpush1.msra.mxu0 0.0
    %81 = vmatprep.subr.mxu0 0.0
    %82 = vmatpush1.msra.mxu0 0.0
    %83 = vmatprep.subr.mxu0 0.0
    %84 = vmatpush1.msra.mxu0 0.0
    %85 = vmatprep.subr.mxu0 0.0
    %86 = vmatpush1.msra.mxu0 0.0
    %87 = vmatprep.subr.mxu0 0.0
    %88 = vmatpush1.msra.mxu0 0.0
    %89 = vmatprep.subr.mxu0 0.0
    %90 = vmatpush1.msra.mxu0 0.0
    %91 = vmatprep.subr.mxu0 0.0
    %92 = vmatpush1.msra.mxu0 0.0
    %93 = vmatprep.subr.mxu0 0.0
    %94 = vmatpush1.msra.mxu0 0.0
    %95 = vmatprep.subr.mxu0 0.0
    %96 = vmatpush1.msra.mxu0 0.0
    %97 = vmatprep.mubr.f32.mxu0 0.0
    %98 = vmatmul.mubr.f32.gmra.mrb[0].mxu0 %v28
    %v99 = vpop.f32.mrb[0].mxu0
    %v100 = vadd.f32 0.0, %v99
    %v101 = vpop.f32.mrb[0].mxu0
    %102 = vmatprep.mubr.f32.mxu0 0.0
    %103 = vmatmul.mubr.f32.gmra.mrb[0].mxu0 %v31
    %v104 = vpop.f32.mrb[0].mxu0
    %v105 = vadd.f32 0.0, %v104
    %v106 = vpop.f32.mrb[0].mxu0
    %107 = vdwg.mxu0
    %v108 = vtanh.pop %v100
    %v109 = vtanh.pop %v105
    %vm110 = vcmask 130048
    %v112 = vsel %vm110, %v108, 0
    %v115 = vsel %vm110, %v109, 0
    %117 = vmatprep.subr.mxu0 0.0
    %118 = vmatpush1.msra.mxu0 %v24
    %119 = vmatprep.subr.mxu0 0.0
    %120 = vmatpush1.msra.mxu0 %v25
    %121 = vmatprep.subr.mxu0 0.0
    %122 = vmatpush1.msra.mxu0 0.0
    %123 = vmatprep.subr.mxu0 0.0
    %124 = vmatpush1.msra.mxu0 0.0
    %125 = vmatprep.subr.mxu0 0.0
    %126 = vmatpush1.msra.mxu0 0.0
    %127 = vmatprep.subr.mxu0 0.0
    %128 = vmatpush1.msra.mxu0 0.0
    %129 = vmatprep.subr.mxu0 0.0
    %130 = vmatpush1.msra.mxu0 0.0
    %131 = vmatprep.subr.mxu0 0.0
    %132 = vmatpush1.msra.mxu0 0.0
    %133 = vmatprep.subr.mxu0 0.0
    %134 = vmatpush1.msra.mxu0 0.0
    %135 = vmatprep.subr.mxu0 0.0
    %136 = vmatpush1.msra.mxu0 0.0
    %137 = vmatprep.subr.mxu0 0.0
    %138 = vmatpush1.msra.mxu0 0.0
    %139 = vmatprep.subr.mxu0 0.0
    %140 = vmatpush1.msra.mxu0 0.0
    %141 = vmatprep.subr.mxu0 0.0
    %142 = vmatpush1.msra.mxu0 0.0
    %143 = vmatprep.subr.mxu0 0.0
    %144 = vmatpush1.msra.mxu0 0.0
    %145 = vmatprep.subr.mxu0 0.0
    %146 = vmatpush1.msra.mxu0 0.0
    %147 = vmatprep.subr.mxu0 0.0
    %148 = vmatpush1.msra.mxu0 0.0
    %149 = vmatprep.subr.mxu0 0.0
    %150 = vmatpush1.msra.mxu0 0.0
    %151 = vmatprep.subr.mxu0 0.0
    %152 = vmatpush1.msra.mxu0 0.0
    %153 = vmatprep.subr.mxu0 0.0
    %154 = vmatpush1.msra.mxu0 0.0
    %155 = vmatprep.subr.mxu0 0.0
    %156 = vmatpush1.msra.mxu0 0.0
    %157 = vmatprep.subr.mxu0 0.0
    %158 = vmatpush1.msra.mxu0 0.0
    %159 = vmatprep.subr.mxu0 0.0
    %160 = vmatpush1.msra.mxu0 0.0
    %161 = vmatprep.subr.mxu0 0.0
    %162 = vmatpush1.msra.mxu0 0.0
    %163 = vmatprep.subr.mxu0 0.0
    %164 = vmatpush1.msra.mxu0 0.0
    %165 = vmatprep.subr.mxu0 0.0
    %166 = vmatpush1.msra.mxu0 0.0
    %167 = vmatprep.subr.mxu0 0.0
    %168 = vmatpush1.msra.mxu0 0.0
    %169 = vmatprep.subr.mxu0 0.0
    %170 = vmatpush1.msra.mxu0 0.0
    %171 = vmatprep.subr.mxu0 0.0
    %172 = vmatpush1.msra.mxu0 0.0
    %173 = vmatprep.subr.mxu0 0.0
    %174 = vmatpush1.msra.mxu0 0.0
    %175 = vmatprep.subr.mxu0 0.0
    %176 = vmatpush1.msra.mxu0 0.0
    %177 = vmatprep.subr.mxu0 0.0
    %178 = vmatpush1.msra.mxu0 0.0
    %179 = vmatprep.subr.mxu0 0.0
    %180 = vmatpush1.msra.mxu0 0.0
    %181 = vmatprep.mubr.f32.mxu0 0.0
    %182 = vmatmul.mubr.f32.gmra.mrb[0].mxu0 %v112
    %v183 = vpop.f32.mrb[0].mxu0
    %v184 = vadd.f32 0.0, %v183
    %v185 = vpop.f32.mrb[0].mxu0
    %186 = vmatprep.mubr.f32.mxu0 0.0
    %187 = vmatmul.mubr.f32.gmra.mrb[0].mxu0 %v115
    %v188 = vpop.f32.mrb[0].mxu0
    %v189 = vadd.f32 0.0, %v188
    %v190 = vpop.f32.mrb[0].mxu0
    %191 = vdwg.mxu0
    %192 = vxpose.xlu0.b32.start [1/16] %v184, 128
    %193 = vxpose.xlu0.b32.cont [2/16] 0.0, 128
    %194 = vxpose.xlu0.b32.cont [3/16] 0.0, 128
    %195 = vxpose.xlu0.b32.cont [4/16] 0.0, 128
    %196 = vxpose.xlu0.b32.cont [5/16] 0.0, 128
    %197 = vxpose.xlu0.b32.cont [6/16] 0.0, 128
    %198 = vxpose.xlu0.b32.cont [7/16] 0.0, 128
    %199 = vxpose.xlu0.b32.cont [8/16] 0.0, 128
    %200 = vxpose.xlu0.b32.cont [9/16] 0.0, 128
    %201 = vxpose.xlu0.b32.cont [10/16] 0.0, 128
    %202 = vxpose.xlu0.b32.cont [11/16] 0.0, 128
    %203 = vxpose.xlu0.b32.cont [12/16] 0.0, 128
    %204 = vxpose.xlu0.b32.cont [13/16] 0.0, 128
    %205 = vxpose.xlu0.b32.cont [14/16] 0.0, 128
    %206 = vxpose.xlu0.b32.cont [15/16] 0.0, 128
    %207 = vxpose.xlu0.b32.end [16/16] 0.0, 128
    %v208 = vpop.trf.xlu0
    %v209 = vpop.trf.xlu0
    %v210 = vpop.trf.xlu0
    %v211 = vpop.trf.xlu0
    %v212 = vpop.trf.xlu0
    %v213 = vpop.trf.xlu0
    %v214 = vpop.trf.xlu0
    %v215 = vpop.trf.xlu0
    %v216 = vpop.trf.xlu0
    %v217 = vpop.trf.xlu0
    %v218 = vpop.trf.xlu0
    %v219 = vpop.trf.xlu0
    %v220 = vpop.trf.xlu0
    %v221 = vpop.trf.xlu0
    %v222 = vpop.trf.xlu0
    %v223 = vpop.trf.xlu0
    %224 = vxpose.xlu0.b32.start [1/16] %v189, 128
    %225 = vxpose.xlu0.b32.cont [2/16] 0.0, 128
    %226 = vxpose.xlu0.b32.cont [3/16] 0.0, 128
    %227 = vxpose.xlu0.b32.cont [4/16] 0.0, 128
    %228 = vxpose.xlu0.b32.cont [5/16] 0.0, 128
    %229 = vxpose.xlu0.b32.cont [6/16] 0.0, 128
    %230 = vxpose.xlu0.b32.cont [7/16] 0.0, 128
    %231 = vxpose.xlu0.b32.cont [8/16] 0.0, 128
    %232 = vxpose.xlu0.b32.cont [9/16] 0.0, 128
    %233 = vxpose.xlu0.b32.cont [10/16] 0.0, 128
    %234 = vxpose.xlu0.b32.cont [11/16] 0.0, 128
    %235 = vxpose.xlu0.b32.cont [12/16] 0.0, 128
    %236 = vxpose.xlu0.b32.cont [13/16] 0.0, 128
    %237 = vxpose.xlu0.b32.cont [14/16] 0.0, 128
    %238 = vxpose.xlu0.b32.cont [15/16] 0.0, 128
    %239 = vxpose.xlu0.b32.end [16/16] 0.0, 128
    %v240 = vpop.trf.xlu0
    %v241 = vpop.trf.xlu0
    %v242 = vpop.trf.xlu0
    %v243 = vpop.trf.xlu0
    %v244 = vpop.trf.xlu0
    %v245 = vpop.trf.xlu0
    %v246 = vpop.trf.xlu0
    %v247 = vpop.trf.xlu0
    %v248 = vpop.trf.xlu0
    %v249 = vpop.trf.xlu0
    %v250 = vpop.trf.xlu0
    %v251 = vpop.trf.xlu0
    %v252 = vpop.trf.xlu0
    %v253 = vpop.trf.xlu0
    %v254 = vpop.trf.xlu0
    %v255 = vpop.trf.xlu0
    %vm256 = vcmask 60416
    %v257 = vsel %vm256, %v208, -inf
    %258 = vmax.xlane.f32.xlu0 %v257
    %v259 = vpop.xlane.xlu0 %258
    %v260 = vsel %vm256, %v240, -inf
    %261 = vmax.xlane.f32.xlu0 %v260
    %v262 = vpop.xlane.xlu0 %261
    %v263 = vsub.f32 %v208, %v259
    %v264 = vsub.f32 %v240, %v262
    %v265 = vmul.f32 %v263, 1.442695
    %v266 = vpow.pop %v265
    %v267 = vmul.f32 %v264, 1.442695
    %v268 = vpow.pop %v267
    %v269 = vsel %vm256, %v266, 0.0
    %270 = vadd.xlane.f32.xlu0 %v269
    %v271 = vpop.xlane.xlu0 %270
    %v272 = vsel %vm256, %v268, 0.0
    %273 = vadd.xlane.f32.xlu0 %v272
    %v274 = vpop.xlane.xlu0 %273
    %v275 = vrcp.pop %v271
    %v276 = vmul.f32 %v266, %v275
    %v277 = vrcp.pop %v274
    %v278 = vmul.f32 %v268, %v277
    %v281 = vcombine.low %v276, %v278
    %vm283 = vcmask 64512
    %284 = vst.msk [vmem:[#allocation4] sm:$0xff] %vm283, %v281
    %v285 = vsel %vm283, %v276, 0
    %287 = vmatprep.subr.mxu0 0.0
    %288 = vmatpush1.msra.mxu0 %v18
    %289 = vmatprep.subr.mxu0 0.0
    %290 = vmatpush1.msra.mxu0 0.0
    %291 = vmatprep.subr.mxu0 0.0
    %292 = vmatpush1.msra.mxu0 0.0
    %293 = vmatprep.subr.mxu0 0.0
    %294 = vmatpush1.msra.mxu0 0.0
    %295 = vmatprep.subr.mxu0 0.0
    %296 = vmatpush1.msra.mxu0 0.0
    %297 = vmatprep.subr.mxu0 0.0
    %298 = vmatpush1.msra.mxu0 0.0
    %299 = vmatprep.subr.mxu0 0.0
    %300 = vmatpush1.msra.mxu0 0.0
    %301 = vmatprep.subr.mxu0 0.0
    %302 = vmatpush1.msra.mxu0 0.0
    %303 = vmatprep.subr.mxu0 0.0
    %304 = vmatpush1.msra.mxu0 0.0
    %305 = vmatprep.subr.mxu0 0.0
    %306 = vmatpush1.msra.mxu0 0.0
    %307 = vmatprep.subr.mxu0 0.0
    %308 = vmatpush1.msra.mxu0 0.0
    %309 = vmatprep.subr.mxu0 0.0
    %310 = vmatpush1.msra.mxu0 0.0
    %311 = vmatprep.subr.mxu0 0.0
    %312 = vmatpush1.msra.mxu0 0.0
    %313 = vmatprep.subr.mxu0 0.0
    %314 = vmatpush1.msra.mxu0 0.0
    %315 = vmatprep.subr.mxu0 0.0
    %316 = vmatpush1.msra.mxu0 0.0
    %317 = vmatprep.subr.mxu0 0.0
    %318 = vmatpush1.msra.mxu0 0.0
    %319 = vmatprep.subr.mxu0 0.0
    %320 = vmatpush1.msra.mxu0 0.0
    %321 = vmatprep.subr.mxu0 0.0
    %322 = vmatpush1.msra.mxu0 0.0
    %323 = vmatprep.subr.mxu0 0.0
    %324 = vmatpush1.msra.mxu0 0.0
    %325 = vmatprep.subr.mxu0 0.0
    %326 = vmatpush1.msra.mxu0 0.0
    %327 = vmatprep.subr.mxu0 0.0
    %328 = vmatpush1.msra.mxu0 0.0
    %329 = vmatprep.subr.mxu0 0.0
    %330 = vmatpush1.msra.mxu0 0.0
    %331 = vmatprep.subr.mxu0 0.0
    %332 = vmatpush1.msra.mxu0 0.0
    %333 = vmatprep.subr.mxu0 0.0
    %334 = vmatpush1.msra.mxu0 0.0
    %335 = vmatprep.subr.mxu0 0.0
    %336 = vmatpush1.msra.mxu0 0.0
    %337 = vmatprep.subr.mxu0 0.0
    %338 = vmatpush1.msra.mxu0 0.0
    %339 = vmatprep.subr.mxu0 0.0
    %340 = vmatpush1.msra.mxu0 0.0
    %341 = vmatprep.subr.mxu0 0.0
    %342 = vmatpush1.msra.mxu0 0.0
    %343 = vmatprep.subr.mxu0 0.0
    %344 = vmatpush1.msra.mxu0 0.0
    %345 = vmatprep.subr.mxu0 0.0
    %346 = vmatpush1.msra.mxu0 0.0
    %347 = vmatprep.subr.mxu0 0.0
    %348 = vmatpush1.msra.mxu0 0.0
    %349 = vmatprep.subr.mxu0 0.0
    %350 = vmatpush1.msra.mxu0 0.0
    %351 = vmatprep.mubr.f32.mxu0 0.0
    %352 = vmatmul.mubr.f32.gmra.mrb[0].mxu0 %v285
    %v353 = vpop.f32.mrb[0].mxu0
    %v354 = vadd.f32 0.0, %v353
    %v355 = vpop.f32.mrb[0].mxu0
    %356 = vdwg.mxu0
    %v357 = vsel %vm283, %v278, 0
    %359 = vmatprep.subr.mxu0 0.0
    %360 = vmatpush1.msra.mxu0 %v19
    %361 = vmatprep.subr.mxu0 0.0
    %362 = vmatpush1.msra.mxu0 0.0
    %363 = vmatprep.subr.mxu0 0.0
    %364 = vmatpush1.msra.mxu0 0.0
    %365 = vmatprep.subr.mxu0 0.0
    %366 = vmatpush1.msra.mxu0 0.0
    %367 = vmatprep.subr.mxu0 0.0
    %368 = vmatpush1.msra.mxu0 0.0
    %369 = vmatprep.subr.mxu0 0.0
    %370 = vmatpush1.msra.mxu0 0.0
    %371 = vmatprep.subr.mxu0 0.0
    %372 = vmatpush1.msra.mxu0 0.0
    %373 = vmatprep.subr.mxu0 0.0
    %374 = vmatpush1.msra.mxu0 0.0
    %375 = vmatprep.subr.mxu0 0.0
    %376 = vmatpush1.msra.mxu0 0.0
    %377 = vmatprep.subr.mxu0 0.0
    %378 = vmatpush1.msra.mxu0 0.0
    %379 = vmatprep.subr.mxu0 0.0
    %380 = vmatpush1.msra.mxu0 0.0
    %381 = vmatprep.subr.mxu0 0.0
    %382 = vmatpush1.msra.mxu0 0.0
    %383 = vmatprep.subr.mxu0 0.0
    %384 = vmatpush1.msra.mxu0 0.0
    %385 = vmatprep.subr.mxu0 0.0
    %386 = vmatpush1.msra.mxu0 0.0
    %387 = vmatprep.subr.mxu0 0.0
    %388 = vmatpush1.msra.mxu0 0.0
    %389 = vmatprep.subr.mxu0 0.0
    %390 = vmatpush1.msra.mxu0 0.0
    %391 = vmatprep.subr.mxu0 0.0
    %392 = vmatpush1.msra.mxu0 0.0
    %393 = vmatprep.subr.mxu0 0.0
    %394 = vmatpush1.msra.mxu0 0.0
    %395 = vmatprep.subr.mxu0 0.0
    %396 = vmatpush1.msra.mxu0 0.0
    %397 = vmatprep.subr.mxu0 0.0
    %398 = vmatpush1.msra.mxu0 0.0
    %399 = vmatprep.subr.mxu0 0.0
    %400 = vmatpush1.msra.mxu0 0.0
    %401 = vmatprep.subr.mxu0 0.0
    %402 = vmatpush1.msra.mxu0 0.0
    %403 = vmatprep.subr.mxu0 0.0
    %404 = vmatpush1.msra.mxu0 0.0
    %405 = vmatprep.subr.mxu0 0.0
    %406 = vmatpush1.msra.mxu0 0.0
    %407 = vmatprep.subr.mxu0 0.0
    %408 = vmatpush1.msra.mxu0 0.0
    %409 = vmatprep.subr.mxu0 0.0
    %410 = vmatpush1.msra.mxu0 0.0
    %411 = vmatprep.subr.mxu0 0.0
    %412 = vmatpush1.msra.mxu0 0.0
    %413 = vmatprep.subr.mxu0 0.0
    %414 = vmatpush1.msra.mxu0 0.0
    %415 = vmatprep.subr.mxu0 0.0
    %416 = vmatpush1.msra.mxu0 0.0
    %417 = vmatprep.subr.mxu0 0.0
    %418 = vmatpush1.msra.mxu0 0.0
    %419 = vmatprep.subr.mxu0 0.0
    %420 = vmatpush1.msra.mxu0 0.0
    %421 = vmatprep.subr.mxu0 0.0
    %422 = vmatpush1.msra.mxu0 0.0
    %423 = vmatprep.mubr.f32.mxu0 0.0
    %424 = vmatmul.mubr.f32.gmra.mrb[0].mxu0 %v357
    %v425 = vpop.f32.mrb[0].mxu0
    %v426 = vadd.f32 0.0, %v425
    %v427 = vpop.f32.mrb[0].mxu0
    %428 = vdwg.mxu0
    %v431 = vcombine.low %v354, %v426
    %433 = vst.msk [vmem:[#allocation2] sm:$0xff] %vm26, %v431
    // Predicated region
    $region14: #{tpu_custom_call.1} parent=1 // pred_check
      _
    $region15: #{tpu_custom_call.1} parent=1 // pred_check_branch
      %435 = sbr.rel (0) target = $region17
    $region16: #{tpu_custom_call.1} parent=1 // pred_region
      %s437 = ssub.s32 128, 128
      %438 = vsyncadd [#allocation3], %s437
      %s440 = sshll.u32 [#allocation2], 4
      %s441 = int_to_ptr.vmem [resolvable:$true] %s440
      %443 = dma.vmem_to_hbm [thread:$0]  %s441, 128, %s3, [#allocation3]
    $region17: #{tpu_custom_call.1} parent=1 // pred_fallthru
      _
    // Predicated region
    $region18: #{tpu_custom_call.1} parent=1 // pred_check
      _
    $region19: #{tpu_custom_call.1} parent=1 // pred_check_branch
      %445 = sbr.rel (0) target = $region21
    $region20: #{tpu_custom_call.1} parent=1 // pred_region
      %s447 = ssub.s32 128, 128
      %448 = vsyncadd [#allocation5], %s447
      %s450 = sshll.u32 [#allocation4], 4
      %s451 = int_to_ptr.vmem [resolvable:$true] %s450
      %453 = dma.vmem_to_hbm [thread:$0]  %s451, 128, %s4, [#allocation5]
    $region21: #{tpu_custom_call.1} parent=1 // pred_fallthru
      _
    // Predicated region
    $region22: #{tpu_custom_call.1} parent=1 // pred_check
      _
    $region23: #{tpu_custom_call.1} parent=1 // pred_check_branch
      %455 = sbr.rel (0) target = $region25
    $region24: #{tpu_custom_call.1} parent=1 // pred_region
      %456 = dma.done [#allocation3], 128
    $region25: #{tpu_custom_call.1} parent=1 // pred_fallthru
      _
    // Predicated region
    $region26: #{tpu_custom_call.1} parent=1 // pred_check
      _
    $region27: #{tpu_custom_call.1} parent=1 // pred_check_branch
      %458 = sbr.rel (0) target = $region29
    $region28: #{tpu_custom_call.1} parent=1 // pred_region
      %459 = dma.done [#allocation5], 128
    $region29: #{tpu_custom_call.1} parent=1 // pred_fallthru
      _
    %460 = vsyncpa [#allocation3], 1
    %461 = vsyncpa [#allocation5], 1

// kernel: tpu_custom_call.1
$region0: #{tpu_custom_call.1}
  #allocation0 [shape = 'u32[]', space=smem, size = 0x4, offset = 0x4, fixed_abs, tag = 'smem constant byte address 0x4 - core index']
  #allocation1 [shape = 'u32[144,128]{1,0:T(1,128)}', space=vmem, size = 0x12000, scoped, tag = 'internal scratch']
  %s0 = inlined_call_operand.vmem [shape: f32[16,32], index: 0, kind: input, shape index: {}]
  %s1 = inlined_call_operand.vmem [shape: f32[32,16], index: 1, kind: input, shape index: {}]
  %s2 = inlined_call_operand.vmem [shape: f32[16,4], index: 2, kind: input, shape index: {}]
  %s3 = inlined_call_operand.hbm [shape: f32[8,32], index: 3, kind: output, shape index: {0}]
  %s4 = inlined_call_operand.hbm [shape: f32[8,8], index: 4, kind: output, shape index: {1}]
  %5 = xla_tuple %s3, %s4
  %s6 = sld [smem:[#allocation0]]
  $region30: #{tpu_custom_call.1} parent=0
    _
  %s8 = ssub.s32 1, %s6
  %s9 = scalar_select 0, %s8, %s6
  $region1: #{tpu_custom_call.1} parent=0
    #allocation2 [shape = 'u8[4096]{0}', space=vmem, size = 0x1000, scoped, tag = 'output window, operand 0, single buffered']
    #allocation3 [shape = 's32[1]{0}', space=sflag, size = 0x4, scoped, tag = 'scoped memory for tpu_custom_call.1']
    #allocation4 [shape = 'u8[4096]{0}', space=vmem, size = 0x1000, scoped, tag = 'output window, operand 1, single buffered']
    #allocation5 [shape = 's32[1]{0}', space=sflag, size = 0x4, scoped, tag = 'scoped memory for tpu_custom_call.1']
    %10 = vsyncpa [#allocation3], 0
    %11 = vsyncpa [#allocation5], 0
    // Predicated region
    $region2: #{tpu_custom_call.1} parent=1 // pred_check
      _
    $region3: #{tpu_custom_call.1} parent=1 // pred_check_branch
      %13 = sbr.rel (0) target = $region5
    $region4: #{tpu_custom_call.1} parent=1 // pred_region
      _
    $region5: #{tpu_custom_call.1} parent=1 // pred_fallthru
      _
    // Predicated region
    $region6: #{tpu_custom_call.1} parent=1 // pred_check
      _
    $region7: #{tpu_custom_call.1} parent=1 // pred_check_branch
      %15 = sbr.rel (0) target = $region9
    $region8: #{tpu_custom_call.1} parent=1 // pred_region
      _
    $region9: #{tpu_custom_call.1} parent=1 // pred_fallthru
      _
    // Predicated region
    $region10: #{tpu_custom_call.1} parent=1 // pred_check
      _
    $region11: #{tpu_custom_call.1} parent=1 // pred_check_branch
      %17 = sbr.rel (0) target = $region13
    $region12: #{tpu_custom_call.1} parent=1 // pred_region
      _
    $region13: #{tpu_custom_call.1} parent=1 // pred_fallthru
      _
    %v18 = vld [vmem:[%s0] sm:$0xff]
    %v19 = vld [vmem:[%s0 + $0x8] sm:$0xff]
    %v20 = vld [vmem:[%s1] sm:$0xff]
    %v21 = vld [vmem:[%s1 + $0x8] sm:$0xff]
    %v22 = vld [vmem:[%s1 + $0x10] sm:$0xff]
    %v23 = vld [vmem:[%s1 + $0x18] sm:$0xff]
    %v24 = vld [vmem:[%s2] sm:$0xff]
    %v25 = vld [vmem:[%s2 + $0x8] sm:$0xff]
    %vm26 = vcmask 261120
    %v28 = vsel %vm26, %v18, 0
    %v31 = vsel %vm26, %v19, 0
    %33 = vmatprep.subr.mxu0 0.0
    %34 = vmatpush1.msra.mxu0 %v20
    %35 = vmatprep.subr.mxu0 0.0
    %36 = vmatpush1.msra.mxu0 %v21
    %37 = vmatprep.subr.mxu0 0.0
    %38 = vmatpush1.msra.mxu0 %v22
    %39 = vmatprep.subr.mxu0 0.0
    %40 = vmatpush1.msra.mxu0 %v23
    %41 = vmatprep.subr.mxu0 0.0
    %42 = vmatpush1.msra.mxu0 0.0
    %43 = vmatprep.subr.mxu0 0.0
    %44 = vmatpush1.msra.mxu0 0.0
    %45 = vmatprep.subr.mxu0 0.0
    %46 = vmatpush1.msra.mxu0 0.0
    %47 = vmatprep.subr.mxu0 0.0
    %48 = vmatpush1.msra.mxu0 0.0
    %49 = vmatprep.subr.mxu0 0.0
    %50 = vmatpush1.msra.mxu0 0.0
    %51 = vmatprep.subr.mxu0 0.0
    %52 = vmatpush1.msra.mxu0 0.0
    %53 = vmatprep.subr.mxu0 0.0
    %54 = vmatpush1.msra.mxu0 0.0
    %55 = vmatprep.subr.mxu0 0.0
    %56 = vmatpush1.msra.mxu0 0.0
    %57 = vmatprep.subr.mxu0 0.0
    %58 = vmatpush1.msra.mxu0 0.0
    %59 = vmatprep.subr.mxu0 0.0
    %60 = vmatpush1.msra.mxu0 0.0
    %61 = vmatprep.subr.mxu0 0.0
    %62 = vmatpush1.msra.mxu0 0.0
    %63 = vmatprep.subr.mxu0 0.0
    %64 = vmatpush1.msra.mxu0 0.0
    %65 = vmatprep.subr.mxu0 0.0
    %66 = vmatpush1.msra.mxu0 0.0
    %67 = vmatprep.subr.mxu0 0.0
    %68 = vmatpush1.msra.mxu0 0.0
    %69 = vmatprep.subr.mxu0 0.0
    %70 = vmatpush1.msra.mxu0 0.0
    %71 = vmatprep.subr.mxu0 0.0
    %72 = vmatpush1.msra.mxu0 0.0
    %73 = vmatprep.subr.mxu0 0.0
    %74 = vmatpush1.msra.mxu0 0.0
    %75 = vmatprep.subr.mxu0 0.0
    %76 = vmatpush1.msra.mxu0 0.0
    %77 = vmatprep.subr.mxu0 0.0
    %78 = vmatpush1.msra.mxu0 0.0
    %79 = vmatprep.subr.mxu0 0.0
    %80 = vmatpush1.msra.mxu0 0.0
    %81 = vmatprep.subr.mxu0 0.0
    %82 = vmatpush1.msra.mxu0 0.0
    %83 = vmatprep.subr.mxu0 0.0
    %84 = vmatpush1.msra.mxu0 0.0
    %85 = vmatprep.subr.mxu0 0.0
    %86 = vmatpush1.msra.mxu0 0.0
    %87 = vmatprep.subr.mxu0 0.0
    %88 = vmatpush1.msra.mxu0 0.0
    %89 = vmatprep.subr.mxu0 0.0
    %90 = vmatpush1.msra.mxu0 0.0
    %91 = vmatprep.subr.mxu0 0.0
    %92 = vmatpush1.msra.mxu0 0.0
    %93 = vmatprep.subr.mxu0 0.0
    %94 = vmatpush1.msra.mxu0 0.0
    %95 = vmatprep.subr.mxu0 0.0
    %96 = vmatpush1.msra.mxu0 0.0
    %97 = vmatprep.mubr.f32.mxu0 0.0
    %98 = vmatmul.mubr.f32.gmra.mrb[0].mxu0 %v28
    %v99 = vpop.f32.mrb[0].mxu0
    %v100 = vadd.f32 0.0, %v99
    %v101 = vpop.f32.mrb[0].mxu0
    %102 = vmatprep.mubr.f32.mxu0 0.0
    %103 = vmatmul.mubr.f32.gmra.mrb[0].mxu0 %v31
    %v104 = vpop.f32.mrb[0].mxu0
    %v105 = vadd.f32 0.0, %v104
    %v106 = vpop.f32.mrb[0].mxu0
    %107 = vdwg.mxu0
    %v108 = vtanh.pop %v100
    %v109 = vtanh.pop %v105
    %vm110 = vcmask 130048
    %v112 = vsel %vm110, %v108, 0
    %v115 = vsel %vm110, %v109, 0
    %117 = vmatprep.subr.mxu0 0.0
    %118 = vmatpush1.msra.mxu0 %v24
    %119 = vmatprep.subr.mxu0 0.0
    %120 = vmatpush1.msra.mxu0 %v25
    %121 = vmatprep.subr.mxu0 0.0
    %122 = vmatpush1.msra.mxu0 0.0
    %123 = vmatprep.subr.mxu0 0.0
    %124 = vmatpush1.msra.mxu0 0.0
    %125 = vmatprep.subr.mxu0 0.0
    %126 = vmatpush1.msra.mxu0 0.0
    %127 = vmatprep.subr.mxu0 0.0
    %128 = vmatpush1.msra.mxu0 0.0
    %129 = vmatprep.subr.mxu0 0.0
    %130 = vmatpush1.msra.mxu0 0.0
    %131 = vmatprep.subr.mxu0 0.0
    %132 = vmatpush1.msra.mxu0 0.0
    %133 = vmatprep.subr.mxu0 0.0
    %134 = vmatpush1.msra.mxu0 0.0
    %135 = vmatprep.subr.mxu0 0.0
    %136 = vmatpush1.msra.mxu0 0.0
    %137 = vmatprep.subr.mxu0 0.0
    %138 = vmatpush1.msra.mxu0 0.0
    %139 = vmatprep.subr.mxu0 0.0
    %140 = vmatpush1.msra.mxu0 0.0
    %141 = vmatprep.subr.mxu0 0.0
    %142 = vmatpush1.msra.mxu0 0.0
    %143 = vmatprep.subr.mxu0 0.0
    %144 = vmatpush1.msra.mxu0 0.0
    %145 = vmatprep.subr.mxu0 0.0
    %146 = vmatpush1.msra.mxu0 0.0
    %147 = vmatprep.subr.mxu0 0.0
    %148 = vmatpush1.msra.mxu0 0.0
    %149 = vmatprep.subr.mxu0 0.0
    %150 = vmatpush1.msra.mxu0 0.0
    %151 = vmatprep.subr.mxu0 0.0
    %152 = vmatpush1.msra.mxu0 0.0
    %153 = vmatprep.subr.mxu0 0.0
    %154 = vmatpush1.msra.mxu0 0.0
    %155 = vmatprep.subr.mxu0 0.0
    %156 = vmatpush1.msra.mxu0 0.0
    %157 = vmatprep.subr.mxu0 0.0
    %158 = vmatpush1.msra.mxu0 0.0
    %159 = vmatprep.subr.mxu0 0.0
    %160 = vmatpush1.msra.mxu0 0.0
    %161 = vmatprep.subr.mxu0 0.0
    %162 = vmatpush1.msra.mxu0 0.0
    %163 = vmatprep.subr.mxu0 0.0
    %164 = vmatpush1.msra.mxu0 0.0
    %165 = vmatprep.subr.mxu0 0.0
    %166 = vmatpush1.msra.mxu0 0.0
    %167 = vmatprep.subr.mxu0 0.0
    %168 = vmatpush1.msra.mxu0 0.0
    %169 = vmatprep.subr.mxu0 0.0
    %170 = vmatpush1.msra.mxu0 0.0
    %171 = vmatprep.subr.mxu0 0.0
    %172 = vmatpush1.msra.mxu0 0.0
    %173 = vmatprep.subr.mxu0 0.0
    %174 = vmatpush1.msra.mxu0 0.0
    %175 = vmatprep.subr.mxu0 0.0
    %176 = vmatpush1.msra.mxu0 0.0
    %177 = vmatprep.subr.mxu0 0.0
    %178 = vmatpush1.msra.mxu0 0.0
    %179 = vmatprep.subr.mxu0 0.0
    %180 = vmatpush1.msra.mxu0 0.0
    %181 = vmatprep.mubr.f32.mxu0 0.0
    %182 = vmatmul.mubr.f32.gmra.mrb[0].mxu0 %v112
    %v183 = vpop.f32.mrb[0].mxu0
    %v184 = vadd.f32 0.0, %v183
    %v185 = vpop.f32.mrb[0].mxu0
    %186 = vmatprep.mubr.f32.mxu0 0.0
    %187 = vmatmul.mubr.f32.gmra.mrb[0].mxu0 %v115
    %v188 = vpop.f32.mrb[0].mxu0
    %v189 = vadd.f32 0.0, %v188
    %v190 = vpop.f32.mrb[0].mxu0
    %191 = vdwg.mxu0
    %192 = vxpose.xlu0.b32.start [1/16] %v184, 128
    %193 = vxpose.xlu0.b32.cont [2/16] 0.0, 128
    %194 = vxpose.xlu0.b32.cont [3/16] 0.0, 128
    %195 = vxpose.xlu0.b32.cont [4/16] 0.0, 128
    %196 = vxpose.xlu0.b32.cont [5/16] 0.0, 128
    %197 = vxpose.xlu0.b32.cont [6/16] 0.0, 128
    %198 = vxpose.xlu0.b32.cont [7/16] 0.0, 128
    %199 = vxpose.xlu0.b32.cont [8/16] 0.0, 128
    %200 = vxpose.xlu0.b32.cont [9/16] 0.0, 128
    %201 = vxpose.xlu0.b32.cont [10/16] 0.0, 128
    %202 = vxpose.xlu0.b32.cont [11/16] 0.0, 128
    %203 = vxpose.xlu0.b32.cont [12/16] 0.0, 128
    %204 = vxpose.xlu0.b32.cont [13/16] 0.0, 128
    %205 = vxpose.xlu0.b32.cont [14/16] 0.0, 128
    %206 = vxpose.xlu0.b32.cont [15/16] 0.0, 128
    %207 = vxpose.xlu0.b32.end [16/16] 0.0, 128
    %v208 = vpop.trf.xlu0
    %v209 = vpop.trf.xlu0
    %v210 = vpop.trf.xlu0
    %v211 = vpop.trf.xlu0
    %v212 = vpop.trf.xlu0
    %v213 = vpop.trf.xlu0
    %v214 = vpop.trf.xlu0
    %v215 = vpop.trf.xlu0
    %v216 = vpop.trf.xlu0
    %v217 = vpop.trf.xlu0
    %v218 = vpop.trf.xlu0
    %v219 = vpop.trf.xlu0
    %v220 = vpop.trf.xlu0
    %v221 = vpop.trf.xlu0
    %v222 = vpop.trf.xlu0
    %v223 = vpop.trf.xlu0
    %224 = vxpose.xlu0.b32.start [1/16] %v189, 128
    %225 = vxpose.xlu0.b32.cont [2/16] 0.0, 128
    %226 = vxpose.xlu0.b32.cont [3/16] 0.0, 128
    %227 = vxpose.xlu0.b32.cont [4/16] 0.0, 128
    %228 = vxpose.xlu0.b32.cont [5/16] 0.0, 128
    %229 = vxpose.xlu0.b32.cont [6/16] 0.0, 128
    %230 = vxpose.xlu0.b32.cont [7/16] 0.0, 128
    %231 = vxpose.xlu0.b32.cont [8/16] 0.0, 128
    %232 = vxpose.xlu0.b32.cont [9/16] 0.0, 128
    %233 = vxpose.xlu0.b32.cont [10/16] 0.0, 128
    %234 = vxpose.xlu0.b32.cont [11/16] 0.0, 128
    %235 = vxpose.xlu0.b32.cont [12/16] 0.0, 128
    %236 = vxpose.xlu0.b32.cont [13/16] 0.0, 128
    %237 = vxpose.xlu0.b32.cont [14/16] 0.0, 128
    %238 = vxpose.xlu0.b32.cont [15/16] 0.0, 128
    %239 = vxpose.xlu0.b32.end [16/16] 0.0, 128
    %v240 = vpop.trf.xlu0
    %v241 = vpop.trf.xlu0
    %v242 = vpop.trf.xlu0
    %v243 = vpop.trf.xlu0
    %v244 = vpop.trf.xlu0
    %v245 = vpop.trf.xlu0
    %v246 = vpop.trf.xlu0
    %v247 = vpop.trf.xlu0
    %v248 = vpop.trf.xlu0
    %v249 = vpop.trf.xlu0
    %v250 = vpop.trf.xlu0
    %v251 = vpop.trf.xlu0
    %v252 = vpop.trf.xlu0
    %v253 = vpop.trf.xlu0
    %v254 = vpop.trf.xlu0
    %v255 = vpop.trf.xlu0
    %vm256 = vcmask 60416
    %v257 = vsel %vm256, %v208, -inf
    %258 = vmax.xlane.f32.xlu0 %v257
    %v259 = vpop.xlane.xlu0 %258
    %v260 = vsel %vm256, %v240, -inf
    %261 = vmax.xlane.f32.xlu0 %v260
    %v262 = vpop.xlane.xlu0 %261
    %v263 = vsub.f32 %v208, %v259
    %v264 = vsub.f32 %v240, %v262
    %v265 = vmul.f32 %v263, 1.442695
    %v266 = vpow.pop %v265
    %v267 = vmul.f32 %v264, 1.442695
    %v268 = vpow.pop %v267
    %v269 = vsel %vm256, %v266, 0.0
    %270 = vadd.xlane.f32.xlu0 %v269
    %v271 = vpop.xlane.xlu0 %270
    %v272 = vsel %vm256, %v268, 0.0
    %273 = vadd.xlane.f32.xlu0 %v272
    %v274 = vpop.xlane.xlu0 %273
    %v275 = vrcp.pop %v271
    %v276 = vmul.f32 %v266, %v275
    %v277 = vrcp.pop %v274
    %v278 = vmul.f32 %v268, %v277
    %v281 = vcombine.low %v276, %v278
    %vm283 = vcmask 64512
    %284 = vst.msk [vmem:[#allocation4] sm:$0xff] %vm283, %v281
    %v285 = vsel %vm283, %v276, 0
    %287 = vmatprep.subr.mxu0 0.0
    %288 = vmatpush1.msra.mxu0 %v18
    %289 = vmatprep.subr.mxu0 0.0
    %290 = vmatpush1.msra.mxu0 0.0
    %291 = vmatprep.subr.mxu0 0.0
    %292 = vmatpush1.msra.mxu0 0.0
    %293 = vmatprep.subr.mxu0 0.0
    %294 = vmatpush1.msra.mxu0 0.0
    %295 = vmatprep.subr.mxu0 0.0
    %296 = vmatpush1.msra.mxu0 0.0
    %297 = vmatprep.subr.mxu0 0.0
    %298 = vmatpush1.msra.mxu0 0.0
    %299 = vmatprep.subr.mxu0 0.0
    %300 = vmatpush1.msra.mxu0 0.0
    %301 = vmatprep.subr.mxu0 0.0
    %302 = vmatpush1.msra.mxu0 0.0
    %303 = vmatprep.subr.mxu0 0.0
    %304 = vmatpush1.msra.mxu0 0.0
    %305 = vmatprep.subr.mxu0 0.0
    %306 = vmatpush1.msra.mxu0 0.0
    %307 = vmatprep.subr.mxu0 0.0
    %308 = vmatpush1.msra.mxu0 0.0
    %309 = vmatprep.subr.mxu0 0.0
    %310 = vmatpush1.msra.mxu0 0.0
    %311 = vmatprep.subr.mxu0 0.0
    %312 = vmatpush1.msra.mxu0 0.0
    %313 = vmatprep.subr.mxu0 0.0
    %314 = vmatpush1.msra.mxu0 0.0
    %315 = vmatprep.subr.mxu0 0.0
    %316 = vmatpush1.msra.mxu0 0.0
    %317 = vmatprep.subr.mxu0 0.0
    %318 = vmatpush1.msra.mxu0 0.0
    %319 = vmatprep.subr.mxu0 0.0
    %320 = vmatpush1.msra.mxu0 0.0
    %321 = vmatprep.subr.mxu0 0.0
    %322 = vmatpush1.msra.mxu0 0.0
    %323 = vmatprep.subr.mxu0 0.0
    %324 = vmatpush1.msra.mxu0 0.0
    %325 = vmatprep.subr.mxu0 0.0
    %326 = vmatpush1.msra.mxu0 0.0
    %327 = vmatprep.subr.mxu0 0.0
    %328 = vmatpush1.msra.mxu0 0.0
    %329 = vmatprep.subr.mxu0 0.0
    %330 = vmatpush1.msra.mxu0 0.0
    %331 = vmatprep.subr.mxu0 0.0
    %332 = vmatpush1.msra.mxu0 0.0
    %333 = vmatprep.subr.mxu0 0.0
    %334 = vmatpush1.msra.mxu0 0.0
    %335 = vmatprep.subr.mxu0 0.0
    %336 = vmatpush1.msra.mxu0 0.0
    %337 = vmatprep.subr.mxu0 0.0
    %338 = vmatpush1.msra.mxu0 0.0
    %339 = vmatprep.subr.mxu0 0.0
    %340 = vmatpush1.msra.mxu0 0.0
    %341 = vmatprep.subr.mxu0 0.0
    %342 = vmatpush1.msra.mxu0 0.0
    %343 = vmatprep.subr.mxu0 0.0
    %344 = vmatpush1.msra.mxu0 0.0
    %345 = vmatprep.subr.mxu0 0.0
    %346 = vmatpush1.msra.mxu0 0.0
    %347 = vmatprep.subr.mxu0 0.0
    %348 = vmatpush1.msra.mxu0 0.0
    %349 = vmatprep.subr.mxu0 0.0
    %350 = vmatpush1.msra.mxu0 0.0
    %351 = vmatprep.mubr.f32.mxu0 0.0
    %352 = vmatmul.mubr.f32.gmra.mrb[0].mxu0 %v285
    %v353 = vpop.f32.mrb[0].mxu0
    %v354 = vadd.f32 0.0, %v353
    %v355 = vpop.f32.mrb[0].mxu0
    %356 = vdwg.mxu0
    %v357 = vsel %vm283, %v278, 0
    %359 = vmatprep.subr.mxu0 0.0
    %360 = vmatpush1.msra.mxu0 %v19
    %361 = vmatprep.subr.mxu0 0.0
    %362 = vmatpush1.msra.mxu0 0.0
    %363 = vmatprep.subr.mxu0 0.0
    %364 = vmatpush1.msra.mxu0 0.0
    %365 = vmatprep.subr.mxu0 0.0
    %366 = vmatpush1.msra.mxu0 0.0
    %367 = vmatprep.subr.mxu0 0.0
    %368 = vmatpush1.msra.mxu0 0.0
    %369 = vmatprep.subr.mxu0 0.0
    %370 = vmatpush1.msra.mxu0 0.0
    %371 = vmatprep.subr.mxu0 0.0
    %372 = vmatpush1.msra.mxu0 0.0
    %373 = vmatprep.subr.mxu0 0.0
    %374 = vmatpush1.msra.mxu0 0.0
    %375 = vmatprep.subr.mxu0 0.0
    %376 = vmatpush1.msra.mxu0 0.0
    %377 = vmatprep.subr.mxu0 0.0
    %378 = vmatpush1.msra.mxu0 0.0
    %379 = vmatprep.subr.mxu0 0.0
    %380 = vmatpush1.msra.mxu0 0.0
    %381 = vmatprep.subr.mxu0 0.0
    %382 = vmatpush1.msra.mxu0 0.0
    %383 = vmatprep.subr.mxu0 0.0
    %384 = vmatpush1.msra.mxu0 0.0
    %385 = vmatprep.subr.mxu0 0.0
    %386 = vmatpush1.msra.mxu0 0.0
    %387 = vmatprep.subr.mxu0 0.0
    %388 = vmatpush1.msra.mxu0 0.0
    %389 = vmatprep.subr.mxu0 0.0
    %390 = vmatpush1.msra.mxu0 0.0
    %391 = vmatprep.subr.mxu0 0.0
    %392 = vmatpush1.msra.mxu0 0.0
    %393 = vmatprep.subr.mxu0 0.0
    %394 = vmatpush1.msra.mxu0 0.0
    %395 = vmatprep.subr.mxu0 0.0
    %396 = vmatpush1.msra.mxu0 0.0
    %397 = vmatprep.subr.mxu0 0.0
    %398 = vmatpush1.msra.mxu0 0.0
    %399 = vmatprep.subr.mxu0 0.0
    %400 = vmatpush1.msra.mxu0 0.0
    %401 = vmatprep.subr.mxu0 0.0
    %402 = vmatpush1.msra.mxu0 0.0
    %403 = vmatprep.subr.mxu0 0.0
    %404 = vmatpush1.msra.mxu0 0.0
    %405 = vmatprep.subr.mxu0 0.0
    %406 = vmatpush1.msra.mxu0 0.0
    %407 = vmatprep.subr.mxu0 0.0
    %408 = vmatpush1.msra.mxu0 0.0
    %409 = vmatprep.subr.mxu0 0.0
    %410 = vmatpush1.msra.mxu0 0.0
    %411 = vmatprep.subr.mxu0 0.0
    %412 = vmatpush1.msra.mxu0 0.0
    %413 = vmatprep.subr.mxu0 0.0
    %414 = vmatpush1.msra.mxu0 0.0
    %415 = vmatprep.subr.mxu0 0.0
    %416 = vmatpush1.msra.mxu0 0.0
    %417 = vmatprep.subr.mxu0 0.0
    %418 = vmatpush1.msra.mxu0 0.0
    %419 = vmatprep.subr.mxu0 0.0
    %420 = vmatpush1.msra.mxu0 0.0
    %421 = vmatprep.subr.mxu0 0.0
    %422 = vmatpush1.msra.mxu0 0.0
    %423 = vmatprep.mubr.f32.mxu0 0.0
    %424 = vmatmul.mubr.f32.gmra.mrb[0].mxu0 %v357
    %v425 = vpop.f32.mrb[0].mxu0
    %v426 = vadd.f32 0.0, %v425
    %v427 = vpop.f32.mrb[0].mxu0
    %428 = vdwg.mxu0
    %v431 = vcombine.low %v354, %v426
    %433 = vst.msk [vmem:[#allocation2] sm:$0xff] %vm26, %v431
    // Predicated region
    $region14: #{tpu_custom_call.1} parent=1 // pred_check
      _
    $region15: #{tpu_custom_call.1} parent=1 // pred_check_branch
      %435 = sbr.rel (0) target = $region17
    $region16: #{tpu_custom_call.1} parent=1 // pred_region
      %s437 = ssub.s32 128, 128
      %438 = vsyncadd [#allocation3], %s437
      %s440 = sshll.u32 [#allocation2], 4
      %s441 = int_to_ptr.vmem [resolvable:$true] %s440
      %443 = dma.vmem_to_hbm [thread:$0]  %s441, 128, %s3, [#allocation3]
    $region17: #{tpu_custom_call.1} parent=1 // pred_fallthru
      _
    // Predicated region
    $region18: #{tpu_custom_call.1} parent=1 // pred_check
      _
    $region19: #{tpu_custom_call.1} parent=1 // pred_check_branch
      %445 = sbr.rel (0) target = $region21
    $region20: #{tpu_custom_call.1} parent=1 // pred_region
      %s447 = ssub.s32 128, 128
      %448 = vsyncadd [#allocation5], %s447
      %s450 = sshll.u32 [#allocation4], 4
      %s451 = int_to_ptr.vmem [resolvable:$true] %s450
      %453 = dma.vmem_to_hbm [thread:$0]  %s451, 128, %s4, [#allocation5]
    $region21: #{tpu_custom_call.1} parent=1 // pred_fallthru
      _
    // Predicated region
    $region22: #{tpu_custom_call.1} parent=1 // pred_check
      _
    $region23: #{tpu_custom_call.1} parent=1 // pred_check_branch
      %455 = sbr.rel (0) target = $region25
    $region24: #{tpu_custom_call.1} parent=1 // pred_region
      %456 = dma.done [#allocation3], 128
    $region25: #{tpu_custom_call.1} parent=1 // pred_fallthru
      _
    // Predicated region
    $region26: #{tpu_custom_call.1} parent=1 // pred_check
      _
    $region27: #{tpu_custom_call.1} parent=1 // pred_check_branch
      %458 = sbr.rel (0) target = $region29
    $region28: #{tpu_custom_call.1} parent=1 // pred_region
      %459 = dma.done [#allocation5], 128
    $region29: #{tpu_custom_call.1} parent=1 // pred_fallthru
      _
    %460 = vsyncpa [#allocation3], 1
    %461 = vsyncpa [#allocation5], 1

</llo_original>
